<compile_context>
chip_gen: v5e
topology: v5e:2x2
jax: 0.10.0
libtpu: 0.0.40
codegen_flags: <defaults>
</compile_context>

<pallas_src>
import functools

import jax
import jax.numpy as jnp
from jax.experimental import pallas as pl
from jax.experimental.pallas import tpu as pltpu

HIDDEN_SIZE = 32
INPUT_SIZE = 2
OUTPUT_SIZE = 1

_SUBLANES = 8            # f32 sublane width -> batch padding target
_MAX_TIME_CHUNK = 512    # multiple of 128 so the (Bp, Tc) output block is lane-dense & legal
_UNROLL_LIMIT = 128      # fully unroll the recurrence (static indices) up to this many steps
_RECURRENT_DTYPE = jnp.float32   # set jnp.bfloat16 for a single-pass MXU recurrent matmul


def _round_up(n, m):
    return ((n + m - 1) // m) * m


def _rnn_kernel(x_ref, h0_ref, wih_ref, whh_ref, b_ref, wfc_ref, bfc_ref,
                out_ref, hout_ref, hs_sc, xp_sc=None, *, tail):
    """One grid step == one chunk of Tc time steps.

    Layouts (time-major inside the kernel):
      x_ref          : (Tc, Bp, I)
      h0_ref/hout_ref: (Bp, H)        (hout_ref is the VMEM-resident hidden carry)
      hs_sc / xp_sc  : (Tc, Bp, H)    (one full (8,128) tile per step)
      out_ref        : (Bp, Tc)       (lane-dense; O == 1 squeezed)
    """
    c = pl.program_id(0)
    Tc, Bp, I = x_ref.shape
    H = whh_ref.shape[0]

    # Load the initial hidden state into the resident (constant-index) output block.
    @pl.when(c == 0)
    def _():
        hout_ref[...] = h0_ref[...]

    # ---- off the serial path: input projection + summed biases for the whole chunk --
    # xp[t, b, :] = x[t, b, :] @ W_ih^T + (b_ih + b_hh)
    x_flat = x_ref[...].reshape(Tc * Bp, I)
    xp = (jnp.dot(x_flat, wih_ref[...], preferred_element_type=jnp.float32)
          + b_ref[...]).reshape(Tc, Bp, H)

    whh = whh_ref[...].astype(_RECURRENT_DTYPE)      # hoisted invariant load
    h = hout_ref[...]

    # Only the last chunk can be partial (sequence padded up to a multiple of Tc).
    n_valid = jnp.where(c == pl.num_programs(0) - 1, tail, Tc) if tail else None

    def recur(t, h, xp_t):
        h_new = jnp.tanh(xp_t + jnp.dot(h.astype(_RECURRENT_DTYPE), whh,
                                        preferred_element_type=jnp.float32))
        if n_valid is not None:                      # mask padded tail steps
            h_new = jnp.where(t < n_valid, h_new, h)
        hs_sc[t] = h_new                             # one full-tile store per step
        return h_new

    if xp_sc is None:
        # Fully unrolled: static slice indices; xp stays an SSA value (no scratch
        # round-trip), letting the scheduler overlap loads/stores with the MXU+tanh chain.
        for t in range(Tc):
            h = recur(t, h, xp[t])
    else:
        xp_sc[...] = xp
        h = jax.lax.fori_loop(0, Tc, lambda t, hh: recur(t, hh, xp_sc[t]), h, unroll=8)

    hout_ref[...] = h        # carry to the next chunk / final hidden state

    # ---- epilogue: FC head over the whole chunk, stored lane-dense as (Bp, Tc) ------
    # O == 1, so the head is a lane reduction; transpose the tiny (Tc, Bp) result once
    # per chunk so the HBM-facing store is dense on lanes.
    o_tb = jnp.sum(hs_sc[...] * wfc_ref[...], axis=-1)            # (Tc, Bp)
    out_ref[...] = (o_tb.T + bfc_ref[...]).astype(out_ref.dtype)  # (Bp, Tc)


@jax.jit
def rnn_forward(x, hidden, params):
    """x: (B, S, I) f32, hidden: (1, B, H) f32 -> (output (B, S, O), hidden (1, B, H))."""
    w_ih, w_hh, b_ih, b_hh, w_fc, b_fc = (
        params["w_ih"], params["w_hh"], params["b_ih"], params["b_hh"],
        params["w_fc"], params["b_fc"])

    B, S, I = x.shape
    H = w_ih.shape[0]
    O = w_fc.shape[0]
    assert O == 1, "lane-dense output path assumes output_size == 1 (per module spec)"

    Bp = _round_up(B, _SUBLANES)                    # pad batch to f32 sublane width
    Tc = S if S <= _MAX_TIME_CHUNK else _MAX_TIME_CHUNK
    n_chunks = -(-S // Tc)
    S_pad = n_chunks * Tc
    tail = S - (n_chunks - 1) * Tc
    tail = 0 if tail == Tc else tail                # 0 -> no tail masking needed
    unrolled = Tc <= _UNROLL_LIMIT

    # Batch padding + time-major layout (S_pad, Bp, I) so kernel blocks are (Tc, Bp, I).
    x_p = x if Bp == B else jnp.pad(x, ((0, Bp - B), (0, 0), (0, 0)))
    x_tm = jnp.transpose(x_p, (1, 0, 2))
    if S_pad != S:
        x_tm = jnp.pad(x_tm, ((0, S_pad - S), (0, 0), (0, 0)))

    h0 = hidden[0]
    h0_p = h0 if Bp == B else jnp.pad(h0, ((0, Bp - B), (0, 0)))

    wih_t = w_ih.T                                  # (I, H)
    whh_t = w_hh.T                                  # (H, H)
    b_rnn = (b_ih + b_hh).reshape(1, H)             # summed once
    wfc_r = w_fc.reshape(1, H)                      # FC head as lane reduction (O == 1)
    bfc = b_fc.reshape(1, 1)

    scratch = [pltpu.VMEM((Tc, Bp, H), jnp.float32)]          # chunk hidden states
    if not unrolled:
        scratch.append(pltpu.VMEM((Tc, Bp, H), jnp.float32))  # chunk input projections

    out_p, h_final_p = pl.pallas_call(
        functools.partial(_rnn_kernel, tail=tail),
        out_shape=(
            jax.ShapeDtypeStruct((Bp, S_pad), jnp.float32),   # lane-dense FC output
            jax.ShapeDtypeStruct((Bp, H), jnp.float32),       # final hidden state
        ),
        grid_spec=pltpu.PrefetchScalarGridSpec(
            num_scalar_prefetch=0,
            grid=(n_chunks,),
            in_specs=[
                pl.BlockSpec((Tc, Bp, I), lambda c: (c, 0, 0)),  # x chunk (time-major)
                pl.BlockSpec((Bp, H), lambda c: (0, 0)),         # h0
                pl.BlockSpec((I, H), lambda c: (0, 0)),          # W_ih^T
                pl.BlockSpec((H, H), lambda c: (0, 0)),          # W_hh^T
                pl.BlockSpec((1, H), lambda c: (0, 0)),          # b_ih + b_hh
                pl.BlockSpec((1, H), lambda c: (0, 0)),          # W_fc row
                pl.BlockSpec((1, 1), lambda c: (0, 0)),          # b_fc
            ],
            out_specs=[
                pl.BlockSpec((Bp, Tc), lambda c: (0, c)),        # per-chunk outputs
                pl.BlockSpec((Bp, H), lambda c: (0, 0)),         # resident hidden carry
            ],
            scratch_shapes=scratch,
        ),
        compiler_params=pltpu.CompilerParams(
            # Time chunks carry state -> sequential.  For real batch sizes (Bp >= 16)
            # a leading "parallel" batch grid axis would engage v7x's second TensorCore.
            dimension_semantics=("arbitrary",),
            vmem_limit_bytes=32 * 1024 * 1024,
        ),
    )(x_tm, h0_p, wih_t, whh_t, b_rnn, wfc_r, bfc)

    output = out_p[:B, :S][..., None]               # (B, S, 1), already batch-major
    h_final = h_final_p[:B]                         # (B, H)
    return output, h_final[None]                    # hidden -> (1, B, H)


def _reference_forward(x, hidden, params):
    """Pure-JAX reference (lax.scan) mirroring nn.RNN + nn.Linear."""
    w_ih, w_hh, b_ih, b_hh, w_fc, b_fc = (
        params["w_ih"], params["w_hh"], params["b_ih"], params["b_hh"],
        params["w_fc"], params["b_fc"])

    def step(h, x_t):
        h_new = jnp.tanh(x_t @ w_ih.T + b_ih + h @ w_hh.T + b_hh)
        return h_new, h_new

    x_tm = jnp.transpose(x, (1, 0, 2))
    h_last, hs = jax.lax.scan(step, hidden[0], x_tm)
    out = hs @ w_fc.T + b_fc                        # (S, B, O)
    return jnp.transpose(out, (1, 0, 2)), h_last[None]


def init_params(key, input_size, hidden_size, output_size):
    """Deterministic init matching PyTorch's default uniform(-1/sqrt(H), 1/sqrt(H))."""
    ks = jax.random.split(key, 6)
    bound = 1.0 / jnp.sqrt(jnp.float32(hidden_size))
    u = lambda k, shape, b: jax.random.uniform(k, shape, jnp.float32, -b, b)
    return {
        "w_ih": u(ks[0], (hidden_size, input_size), bound),
        "w_hh": u(ks[1], (hidden_size, hidden_size), bound),
        "b_ih": u(ks[2], (hidden_size,), bound),
        "b_hh": u(ks[3], (hidden_size,), bound),
        "w_fc": u(ks[4], (output_size, hidden_size), bound),
        "b_fc": u(ks[5], (output_size,), bound),
    }


if __name__ == "__main__":
    key = jax.random.PRNGKey(0)
    k_params, k_x, k_h = jax.random.split(key, 3)

    batch, seq = 2, 8
    params = init_params(k_params, INPUT_SIZE, HIDDEN_SIZE, OUTPUT_SIZE)
    x = jax.random.normal(k_x, (batch, seq, INPUT_SIZE), jnp.float32)
    hidden = jax.random.normal(k_h, (1, batch, HIDDEN_SIZE), jnp.float32)

    out, h_final = rnn_forward(x, hidden, params)
    jax.block_until_ready((out, h_final))

    ref_out, ref_h = _reference_forward(x, hidden, params)
    assert out.shape == (batch, seq, OUTPUT_SIZE)
    assert h_final.shape == (1, batch, HIDDEN_SIZE)
    assert jnp.allclose(out, ref_out, atol=1e-5, rtol=1e-5)
    assert jnp.allclose(h_final, ref_h, atol=1e-5, rtol=1e-5)

    print("KERNEL_OK")
</pallas_src>

<mosaic_0001>
module attributes {stable_mosaic.version = 11 : i64} {
  func.func @_rnn_kernel(%arg0: i32, %arg1: memref<8x8x2xf32, #tpu.memory_space<vmem>>, %arg2: memref<8x32xf32, #tpu.memory_space<vmem>>, %arg3: memref<2x32xf32, #tpu.memory_space<vmem>>, %arg4: memref<32x32xf32, #tpu.memory_space<vmem>>, %arg5: memref<1x32xf32, #tpu.memory_space<vmem>>, %arg6: memref<1x32xf32, #tpu.memory_space<vmem>>, %arg7: memref<1x1xf32, #tpu.memory_space<vmem>>, %arg8: memref<8x8xf32, #tpu.memory_space<vmem>>, %arg9: memref<8x32xf32, #tpu.memory_space<vmem>>, %arg10: memref<8x8x32xf32, #tpu.memory_space<vmem>>) attributes {dimension_semantics = [#tpu.dimension_semantics<arbitrary>], iteration_bounds = array<i64: 1>, scalar_prefetch = 0 : i64, scratch_operands = 1 : i64, tpu.core_type = #tpu.core_type<tc>, window_params = [{transform_indices = @transform_0, window_bounds = array<i64: 8, 8, 2>}, {pipeline_mode = #tpu.pipeline_mode<synchronous>, transform_indices = @transform_1, window_bounds = array<i64: 8, 32>}, {pipeline_mode = #tpu.pipeline_mode<synchronous>, transform_indices = @transform_2, window_bounds = array<i64: 2, 32>}, {pipeline_mode = #tpu.pipeline_mode<synchronous>, transform_indices = @transform_3, window_bounds = array<i64: 32, 32>}, {pipeline_mode = #tpu.pipeline_mode<synchronous>, transform_indices = @transform_4, window_bounds = array<i64: 1, 32>}, {pipeline_mode = #tpu.pipeline_mode<synchronous>, transform_indices = @transform_5, window_bounds = array<i64: 1, 32>}, {pipeline_mode = #tpu.pipeline_mode<synchronous>, transform_indices = @transform_6, window_bounds = array<i64: 1, 1>}, {transform_indices = @transform_7, window_bounds = array<i64: 8, 8>}, {pipeline_mode = #tpu.pipeline_mode<synchronous>, transform_indices = @transform_8, window_bounds = array<i64: 8, 32>}]} {
    %c0_i32 = arith.constant 0 : i32
    %0 = arith.cmpi eq, %arg0, %c0_i32 : i32
    %1 = arith.extui %0 : i1 to i32
    %c0_i32_0 = arith.constant 0 : i32
    %2 = arith.cmpi ne, %1, %c0_i32_0 : i32
    scf.if %2 {
      %c0_48 = arith.constant 0 : index
      %c0_49 = arith.constant 0 : index
      %89 = vector.load %arg2[%c0_48, %c0_49] : memref<8x32xf32, #tpu.memory_space<vmem>>, vector<8x32xf32>
      %c0_50 = arith.constant 0 : index
      %c0_51 = arith.constant 0 : index
      %90 = vector.load %arg9[%c0_50, %c0_51] : memref<8x32xf32, #tpu.memory_space<vmem>>, vector<8x32xf32>
      tpu.vector_store %arg9[%c0_50, %c0_51], %89 {strides = array<i32>} : memref<8x32xf32, #tpu.memory_space<vmem>>, vector<8x32xf32>,
    } else {
    }
    %c0 = arith.constant 0 : index
    %c0_1 = arith.constant 0 : index
    %c0_2 = arith.constant 0 : index
    %3 = vector.load %arg1[%c0, %c0_1, %c0_2] : memref<8x8x2xf32, #tpu.memory_space<vmem>>, vector<8x8x2xf32>
    %4 = vector.shape_cast %3 : vector<8x8x2xf32> to vector<64x2xf32>
    %c0_3 = arith.constant 0 : index
    %c0_4 = arith.constant 0 : index
    %5 = vector.load %arg3[%c0_3, %c0_4] : memref<2x32xf32, #tpu.memory_space<vmem>>, vector<2x32xf32>
    %cst = arith.constant dense<0.000000e+00> : vector<64x32xf32>
    %6 = tpu.matmul %4, %5, %cst {dimension_numbers = #tpu.dot_dimension_numbers<[1], [0], [0], [1], [0, 0, 1, 1], [], []>} : vector<64x2xf32>, vector<2x32xf32>, vector<64x32xf32> -> vector<64x32xf32>
    %c0_5 = arith.constant 0 : index
    %c0_6 = arith.constant 0 : index
    %7 = vector.load %arg5[%c0_5, %c0_6] : memref<1x32xf32, #tpu.memory_space<vmem>>, vector<1x32xf32>
    %8 = vector.broadcast %7 : vector<1x32xf32> to vector<64x32xf32>
    %9 = arith.addf %6, %8 : vector<64x32xf32>
    %10 = vector.shape_cast %9 : vector<64x32xf32> to vector<8x8x32xf32>
    %c0_7 = arith.constant 0 : index
    %c0_8 = arith.constant 0 : index
    %11 = vector.load %arg4[%c0_7, %c0_8] : memref<32x32xf32, #tpu.memory_space<vmem>>, vector<32x32xf32>
    %c0_9 = arith.constant 0 : index
    %c0_10 = arith.constant 0 : index
    %12 = vector.load %arg9[%c0_9, %c0_10] : memref<8x32xf32, #tpu.memory_space<vmem>>, vector<8x32xf32>
    %13 = vector.extract_strided_slice %10 {offsets = [0, 0, 0], sizes = [1, 8, 32], strides = [1, 1, 1]} : vector<8x8x32xf32> to vector<1x8x32xf32>
    %14 = vector.shape_cast %13 : vector<1x8x32xf32> to vector<8x32xf32>
    %cst_11 = arith.constant dense<0.000000e+00> : vector<8x32xf32>
    %15 = tpu.matmul %12, %11, %cst_11 {dimension_numbers = #tpu.dot_dimension_numbers<[1], [0], [0], [1], [0, 0, 1, 1], [], []>} : vector<8x32xf32>, vector<32x32xf32>, vector<8x32xf32> -> vector<8x32xf32>
    %16 = arith.addf %14, %15 : vector<8x32xf32>
    %17 = math.tanh %16 : vector<8x32xf32>
    %c0_12 = arith.constant 0 : index
    %c0_13 = arith.constant 0 : index
    %c0_14 = arith.constant 0 : index
    %18 = vector.load %arg10[%c0_12, %c0_13, %c0_14] : memref<8x8x32xf32, #tpu.memory_space<vmem>>, vector<1x8x32xf32>
    %19 = vector.shape_cast %18 : vector<1x8x32xf32> to vector<8x32xf32>
    %20 = vector.shape_cast %17 : vector<8x32xf32> to vector<1x8x32xf32>
    tpu.vector_store %arg10[%c0_12, %c0_13, %c0_14], %20 {strides = array<i32>} : memref<8x8x32xf32, #tpu.memory_space<vmem>>, vector<1x8x32xf32>,
    %21 = vector.extract_strided_slice %10 {offsets = [1, 0, 0], sizes = [1, 8, 32], strides = [1, 1, 1]} : vector<8x8x32xf32> to vector<1x8x32xf32>
    %22 = vector.shape_cast %21 : vector<1x8x32xf32> to vector<8x32xf32>
    %cst_15 = arith.constant dense<0.000000e+00> : vector<8x32xf32>
    %23 = tpu.matmul %17, %11, %cst_15 {dimension_numbers = #tpu.dot_dimension_numbers<[1], [0], [0], [1], [0, 0, 1, 1], [], []>} : vector<8x32xf32>, vector<32x32xf32>, vector<8x32xf32> -> vector<8x32xf32>
    %24 = arith.addf %22, %23 : vector<8x32xf32>
    %25 = math.tanh %24 : vector<8x32xf32>
    %c1 = arith.constant 1 : index
    %c0_16 = arith.constant 0 : index
    %c0_17 = arith.constant 0 : index
    %26 = vector.load %arg10[%c1, %c0_16, %c0_17] : memref<8x8x32xf32, #tpu.memory_space<vmem>>, vector<1x8x32xf32>
    %27 = vector.shape_cast %26 : vector<1x8x32xf32> to vector<8x32xf32>
    %28 = vector.shape_cast %25 : vector<8x32xf32> to vector<1x8x32xf32>
    tpu.vector_store %arg10[%c1, %c0_16, %c0_17], %28 {strides = array<i32>} : memref<8x8x32xf32, #tpu.memory_space<vmem>>, vector<1x8x32xf32>,
    %29 = vector.extract_strided_slice %10 {offsets = [2, 0, 0], sizes = [1, 8, 32], strides = [1, 1, 1]} : vector<8x8x32xf32> to vector<1x8x32xf32>
    %30 = vector.shape_cast %29 : vector<1x8x32xf32> to vector<8x32xf32>
    %cst_18 = arith.constant dense<0.000000e+00> : vector<8x32xf32>
    %31 = tpu.matmul %25, %11, %cst_18 {dimension_numbers = #tpu.dot_dimension_numbers<[1], [0], [0], [1], [0, 0, 1, 1], [], []>} : vector<8x32xf32>, vector<32x32xf32>, vector<8x32xf32> -> vector<8x32xf32>
    %32 = arith.addf %30, %31 : vector<8x32xf32>
    %33 = math.tanh %32 : vector<8x32xf32>
    %c2 = arith.constant 2 : index
    %c0_19 = arith.constant 0 : index
    %c0_20 = arith.constant 0 : index
    %34 = vector.load %arg10[%c2, %c0_19, %c0_20] : memref<8x8x32xf32, #tpu.memory_space<vmem>>, vector<1x8x32xf32>
    %35 = vector.shape_cast %34 : vector<1x8x32xf32> to vector<8x32xf32>
    %36 = vector.shape_cast %33 : vector<8x32xf32> to vector<1x8x32xf32>
    tpu.vector_store %arg10[%c2, %c0_19, %c0_20], %36 {strides = array<i32>} : memref<8x8x32xf32, #tpu.memory_space<vmem>>, vector<1x8x32xf32>,
    %37 = vector.extract_strided_slice %10 {offsets = [3, 0, 0], sizes = [1, 8, 32], strides = [1, 1, 1]} : vector<8x8x32xf32> to vector<1x8x32xf32>
    %38 = vector.shape_cast %37 : vector<1x8x32xf32> to vector<8x32xf32>
    %cst_21 = arith.constant dense<0.000000e+00> : vector<8x32xf32>
    %39 = tpu.matmul %33, %11, %cst_21 {dimension_numbers = #tpu.dot_dimension_numbers<[1], [0], [0], [1], [0, 0, 1, 1], [], []>} : vector<8x32xf32>, vector<32x32xf32>, vector<8x32xf32> -> vector<8x32xf32>
    %40 = arith.addf %38, %39 : vector<8x32xf32>
    %41 = math.tanh %40 : vector<8x32xf32>
    %c3 = arith.constant 3 : index
    %c0_22 = arith.constant 0 : index
    %c0_23 = arith.constant 0 : index
    %42 = vector.load %arg10[%c3, %c0_22, %c0_23] : memref<8x8x32xf32, #tpu.memory_space<vmem>>, vector<1x8x32xf32>
    %43 = vector.shape_cast %42 : vector<1x8x32xf32> to vector<8x32xf32>
    %44 = vector.shape_cast %41 : vector<8x32xf32> to vector<1x8x32xf32>
    tpu.vector_store %arg10[%c3, %c0_22, %c0_23], %44 {strides = array<i32>} : memref<8x8x32xf32, #tpu.memory_space<vmem>>, vector<1x8x32xf32>,
    %45 = vector.extract_strided_slice %10 {offsets = [4, 0, 0], sizes = [1, 8, 32], strides = [1, 1, 1]} : vector<8x8x32xf32> to vector<1x8x32xf32>
    %46 = vector.shape_cast %45 : vector<1x8x32xf32> to vector<8x32xf32>
    %cst_24 = arith.constant dense<0.000000e+00> : vector<8x32xf32>
    %47 = tpu.matmul %41, %11, %cst_24 {dimension_numbers = #tpu.dot_dimension_numbers<[1], [0], [0], [1], [0, 0, 1, 1], [], []>} : vector<8x32xf32>, vector<32x32xf32>, vector<8x32xf32> -> vector<8x32xf32>
    %48 = arith.addf %46, %47 : vector<8x32xf32>
    %49 = math.tanh %48 : vector<8x32xf32>
    %c4 = arith.constant 4 : index
    %c0_25 = arith.constant 0 : index
    %c0_26 = arith.constant 0 : index
    %50 = vector.load %arg10[%c4, %c0_25, %c0_26] : memref<8x8x32xf32, #tpu.memory_space<vmem>>, vector<1x8x32xf32>
    %51 = vector.shape_cast %50 : vector<1x8x32xf32> to vector<8x32xf32>
    %52 = vector.shape_cast %49 : vector<8x32xf32> to vector<1x8x32xf32>
    tpu.vector_store %arg10[%c4, %c0_25, %c0_26], %52 {strides = array<i32>} : memref<8x8x32xf32, #tpu.memory_space<vmem>>, vector<1x8x32xf32>,
    %53 = vector.extract_strided_slice %10 {offsets = [5, 0, 0], sizes = [1, 8, 32], strides = [1, 1, 1]} : vector<8x8x32xf32> to vector<1x8x32xf32>
    %54 = vector.shape_cast %53 : vector<1x8x32xf32> to vector<8x32xf32>
    %cst_27 = arith.constant dense<0.000000e+00> : vector<8x32xf32>
    %55 = tpu.matmul %49, %11, %cst_27 {dimension_numbers = #tpu.dot_dimension_numbers<[1], [0], [0], [1], [0, 0, 1, 1], [], []>} : vector<8x32xf32>, vector<32x32xf32>, vector<8x32xf32> -> vector<8x32xf32>
    %56 = arith.addf %54, %55 : vector<8x32xf32>
    %57 = math.tanh %56 : vector<8x32xf32>
    %c5 = arith.constant 5 : index
    %c0_28 = arith.constant 0 : index
    %c0_29 = arith.constant 0 : index
    %58 = vector.load %arg10[%c5, %c0_28, %c0_29] : memref<8x8x32xf32, #tpu.memory_space<vmem>>, vector<1x8x32xf32>
    %59 = vector.shape_cast %58 : vector<1x8x32xf32> to vector<8x32xf32>
    %60 = vector.shape_cast %57 : vector<8x32xf32> to vector<1x8x32xf32>
    tpu.vector_store %arg10[%c5, %c0_28, %c0_29], %60 {strides = array<i32>} : memref<8x8x32xf32, #tpu.memory_space<vmem>>, vector<1x8x32xf32>,
    %61 = vector.extract_strided_slice %10 {offsets = [6, 0, 0], sizes = [1, 8, 32], strides = [1, 1, 1]} : vector<8x8x32xf32> to vector<1x8x32xf32>
    %62 = vector.shape_cast %61 : vector<1x8x32xf32> to vector<8x32xf32>
    %cst_30 = arith.constant dense<0.000000e+00> : vector<8x32xf32>
    %63 = tpu.matmul %57, %11, %cst_30 {dimension_numbers = #tpu.dot_dimension_numbers<[1], [0], [0], [1], [0, 0, 1, 1], [], []>} : vector<8x32xf32>, vector<32x32xf32>, vector<8x32xf32> -> vector<8x32xf32>
    %64 = arith.addf %62, %63 : vector<8x32xf32>
    %65 = math.tanh %64 : vector<8x32xf32>
    %c6 = arith.constant 6 : index
    %c0_31 = arith.constant 0 : index
    %c0_32 = arith.constant 0 : index
    %66 = vector.load %arg10[%c6, %c0_31, %c0_32] : memref<8x8x32xf32, #tpu.memory_space<vmem>>, vector<1x8x32xf32>
    %67 = vector.shape_cast %66 : vector<1x8x32xf32> to vector<8x32xf32>
    %68 = vector.shape_cast %65 : vector<8x32xf32> to vector<1x8x32xf32>
    tpu.vector_store %arg10[%c6, %c0_31, %c0_32], %68 {strides = array<i32>} : memref<8x8x32xf32, #tpu.memory_space<vmem>>, vector<1x8x32xf32>,
    %69 = vector.extract_strided_slice %10 {offsets = [7, 0, 0], sizes = [1, 8, 32], strides = [1, 1, 1]} : vector<8x8x32xf32> to vector<1x8x32xf32>
    %70 = vector.shape_cast %69 : vector<1x8x32xf32> to vector<8x32xf32>
    %cst_33 = arith.constant dense<0.000000e+00> : vector<8x32xf32>
    %71 = tpu.matmul %65, %11, %cst_33 {dimension_numbers = #tpu.dot_dimension_numbers<[1], [0], [0], [1], [0, 0, 1, 1], [], []>} : vector<8x32xf32>, vector<32x32xf32>, vector<8x32xf32> -> vector<8x32xf32>
    %72 = arith.addf %70, %71 : vector<8x32xf32>
    %73 = math.tanh %72 : vector<8x32xf32>
    %c7 = arith.constant 7 : index
    %c0_34 = arith.constant 0 : index
    %c0_35 = arith.constant 0 : index
    %74 = vector.load %arg10[%c7, %c0_34, %c0_35] : memref<8x8x32xf32, #tpu.memory_space<vmem>>, vector<1x8x32xf32>
    %75 = vector.shape_cast %74 : vector<1x8x32xf32> to vector<8x32xf32>
    %76 = vector.shape_cast %73 : vector<8x32xf32> to vector<1x8x32xf32>
    tpu.vector_store %arg10[%c7, %c0_34, %c0_35], %76 {strides = array<i32>} : memref<8x8x32xf32, #tpu.memory_space<vmem>>, vector<1x8x32xf32>,
    %c0_36 = arith.constant 0 : index
    %c0_37 = arith.constant 0 : index
    %77 = vector.load %arg9[%c0_36, %c0_37] : memref<8x32xf32, #tpu.memory_space<vmem>>, vector<8x32xf32>
    tpu.vector_store %arg9[%c0_36, %c0_37], %73 {strides = array<i32>} : memref<8x32xf32, #tpu.memory_space<vmem>>, vector<8x32xf32>,
    %c0_38 = arith.constant 0 : index
    %c0_39 = arith.constant 0 : index
    %c0_40 = arith.constant 0 : index
    %78 = vector.load %arg10[%c0_38, %c0_39, %c0_40] : memref<8x8x32xf32, #tpu.memory_space<vmem>>, vector<8x8x32xf32>
    %c0_41 = arith.constant 0 : index
    %c0_42 = arith.constant 0 : index
    %79 = vector.load %arg6[%c0_41, %c0_42] : memref<1x32xf32, #tpu.memory_space<vmem>>, vector<1x32xf32>
    %80 = vector.shape_cast %79 : vector<1x32xf32> to vector<1x1x32xf32>
    %81 = vector.broadcast %80 : vector<1x1x32xf32> to vector<8x8x32xf32>
    %82 = arith.mulf %78, %81 : vector<8x8x32xf32>
    %cst_43 = arith.constant dense<0.000000e+00> : vector<8x8xf32>
    %83 = vector.multi_reduction <add>, %82, %cst_43 [2] : vector<8x8x32xf32> to vector<8x8xf32>
    %84 = tpu.transpose %83, [1, 0] : vector<8x8xf32> -> vector<8x8xf32>
    %c0_44 = arith.constant 0 : index
    %c0_45 = arith.constant 0 : index
    %85 = vector.load %arg7[%c0_44, %c0_45] : memref<1x1xf32, #tpu.memory_space<vmem>>, vector<1x1xf32>
    %86 = vector.broadcast %85 : vector<1x1xf32> to vector<8x8xf32>
    %87 = arith.addf %84, %86 : vector<8x8xf32>
    %c0_46 = arith.constant 0 : index
    %c0_47 = arith.constant 0 : index
    %88 = vector.load %arg8[%c0_46, %c0_47] : memref<8x8xf32, #tpu.memory_space<vmem>>, vector<8x8xf32>
    tpu.vector_store %arg8[%c0_46, %c0_47], %87 {strides = array<i32>} : memref<8x8xf32, #tpu.memory_space<vmem>>, vector<8x8xf32>,
    return
  }
  func.func @transform_0(%arg0: i32) -> (i32, i32, i32) {
    %c0_i32 = arith.constant 0 : i32
    %c0_i32_0 = arith.constant 0 : i32
    %c0_i32_1 = arith.constant 0 : i32
    return %arg0, %c0_i32, %c0_i32_0 : i32, i32, i32
  }
  func.func @transform_1(%arg0: i32) -> (i32, i32) {
    %c0_i32 = arith.constant 0 : i32
    %c0_i32_0 = arith.constant 0 : i32
    %c0_i32_1 = arith.constant 0 : i32
    return %c0_i32, %c0_i32_0 : i32, i32
  }
  func.func @transform_2(%arg0: i32) -> (i32, i32) {
    %c0_i32 = arith.constant 0 : i32
    %c0_i32_0 = arith.constant 0 : i32
    %c0_i32_1 = arith.constant 0 : i32
    return %c0_i32, %c0_i32_0 : i32, i32
  }
  func.func @transform_3(%arg0: i32) -> (i32, i32) {
    %c0_i32 = arith.constant 0 : i32
    %c0_i32_0 = arith.constant 0 : i32
    %c0_i32_1 = arith.constant 0 : i32
    return %c0_i32, %c0_i32_0 : i32, i32
  }
  func.func @transform_4(%arg0: i32) -> (i32, i32) {
    %c0_i32 = arith.constant 0 : i32
    %c0_i32_0 = arith.constant 0 : i32
    %c0_i32_1 = arith.constant 0 : i32
    return %c0_i32, %c0_i32_0 : i32, i32
  }
  func.func @transform_5(%arg0: i32) -> (i32, i32) {
    %c0_i32 = arith.constant 0 : i32
    %c0_i32_0 = arith.constant 0 : i32
    %c0_i32_1 = arith.constant 0 : i32
    return %c0_i32, %c0_i32_0 : i32, i32
  }
  func.func @transform_6(%arg0: i32) -> (i32, i32) {
    %c0_i32 = arith.constant 0 : i32
    %c0_i32_0 = arith.constant 0 : i32
    %c0_i32_1 = arith.constant 0 : i32
    return %c0_i32, %c0_i32_0 : i32, i32
  }
  func.func @transform_7(%arg0: i32) -> (i32, i32) {
    %c0_i32 = arith.constant 0 : i32
    %c0_i32_0 = arith.constant 0 : i32
    return %c0_i32, %arg0 : i32, i32
  }
  func.func @transform_8(%arg0: i32) -> (i32, i32) {
    %c0_i32 = arith.constant 0 : i32
    %c0_i32_0 = arith.constant 0 : i32
    %c0_i32_1 = arith.constant 0 : i32
    return %c0_i32, %c0_i32_0 : i32, i32
  }
}

</mosaic_0001>

<llo_original>
// kernel: rnn_forward.1
$region0: #{rnn_forward.1}
  #allocation0 [shape = 'u32[]', space=smem, size = 0x4, offset = 0x4, fixed_abs, tag = 'smem constant byte address 0x4 - core index']
  #allocation1 [shape = 'u32[72,128]{1,0:T(1,128)}', space=vmem, size = 0x9000, scoped, tag = 'internal scratch']
  #allocation2 [shape = 'f32[8,8,32]{2,1,0:T(8,128)}', space=vmem, size = 0x8000, scoped, tag = 'scratch operand']
  #allocation3 [shape = 'f32[1,1]{1,0:T(1,128)S(1)}', space=vmem, size = 0x200, scoped, tag = 'scoped memory for rnn_forward.1']
  %s0 = inlined_call_operand.vmem [shape: f32[8,8,2], index: 0, kind: input, shape index: {}]
  %s1 = inlined_call_operand.vmem [shape: f32[8,32], index: 1, kind: input, shape index: {}]
  %s2 = inlined_call_operand.vmem [shape: f32[2,32], index: 2, kind: input, shape index: {}]
  %s3 = inlined_call_operand.vmem [shape: f32[32,32], index: 3, kind: input, shape index: {}]
  %s4 = inlined_call_operand.vmem [shape: f32[1,32], index: 4, kind: input, shape index: {}]
  %s5 = inlined_call_operand.vmem [shape: f32[1,32], index: 5, kind: input, shape index: {}]
  %s6 = inlined_call_operand.<no memory space> [shape: f32[1,1], index: 6, kind: input, shape index: {}]
  %s7 = inlined_call_operand.vmem [shape: f32[8,8], index: 7, kind: output, shape index: {0}]
  %s8 = inlined_call_operand.vmem [shape: f32[8,32], index: 8, kind: output, shape index: {1}]
  %9 = xla_tuple %s7, %s8
  %s10 = sld [smem:[#allocation0]]
  $region50: #{rnn_forward.1} parent=0
    _
  %s12 = ssub.s32 1, %s10
  %s13 = scalar_select 0, %s12, %s10
  %v14 = vstv %s6
  %15 = vst [vmem:[#allocation3] sm:$0x1] %v14
  // Predicated region
  $region2: #{rnn_forward.1} parent=0 // pred_check
    _
  $region3: #{rnn_forward.1} parent=0 // pred_check_branch
    %17 = sbr.rel (0) target = $region5
  $region4: #{rnn_forward.1} parent=0 // pred_region
    _
  $region5: #{rnn_forward.1} parent=0 // pred_fallthru
    _
  // Predicated region
  $region6: #{rnn_forward.1} parent=0 // pred_check
    _
  $region7: #{rnn_forward.1} parent=0 // pred_check_branch
    %19 = sbr.rel (0) target = $region9
  $region8: #{rnn_forward.1} parent=0 // pred_region
    _
  $region9: #{rnn_forward.1} parent=0 // pred_fallthru
    _
  // Predicated region
  $region10: #{rnn_forward.1} parent=0 // pred_check
    _
  $region11: #{rnn_forward.1} parent=0 // pred_check_branch
    %21 = sbr.rel (0) target = $region13
  $region12: #{rnn_forward.1} parent=0 // pred_region
    _
  $region13: #{rnn_forward.1} parent=0 // pred_fallthru
    _
  // Predicated region
  $region14: #{rnn_forward.1} parent=0 // pred_check
    _
  $region15: #{rnn_forward.1} parent=0 // pred_check_branch
    %23 = sbr.rel (0) target = $region17
  $region16: #{rnn_forward.1} parent=0 // pred_region
    _
  $region17: #{rnn_forward.1} parent=0 // pred_fallthru
    _
  // Predicated region
  $region18: #{rnn_forward.1} parent=0 // pred_check
    _
  $region19: #{rnn_forward.1} parent=0 // pred_check_branch
    %25 = sbr.rel (0) target = $region21
  $region20: #{rnn_forward.1} parent=0 // pred_region
    _
  $region21: #{rnn_forward.1} parent=0 // pred_fallthru
    _
  // Predicated region
  $region22: #{rnn_forward.1} parent=0 // pred_check
    _
  $region23: #{rnn_forward.1} parent=0 // pred_check_branch
    %27 = sbr.rel (0) target = $region25
  $region24: #{rnn_forward.1} parent=0 // pred_region
    _
  $region25: #{rnn_forward.1} parent=0 // pred_fallthru
    _
  // Predicated region
  $region26: #{rnn_forward.1} parent=0 // pred_check
    _
  $region27: #{rnn_forward.1} parent=0 // pred_check_branch
    %29 = sbr.rel (0) target = $region29
  $region28: #{rnn_forward.1} parent=0 // pred_region
    _
  $region29: #{rnn_forward.1} parent=0 // pred_fallthru
    _
  %p30 = scmp.eq.s32.totalorder 0, 0
  // Predicated region
  $region30: #{rnn_forward.1} parent=0 // pred_check
    %p31 = pneg %p30
  $region31: #{rnn_forward.1} parent=0 // pred_check_branch
    %33 = sbr.rel (%p31) target = $region33
  $region32: #{rnn_forward.1} parent=0 // pred_region
    %v34 = vld [vmem:[%s1] sm:$0xff]
    %vm35 = vcmask 261120
    %36 = vst.msk [vmem:[%s8] sm:$0xff] %vm35, %v34
  $region33: #{rnn_forward.1} parent=0 // pred_fallthru
    _
  %v37 = vld [vmem:[%s0] sm:$0xff]
  %v38 = vld [vmem:[%s0 + $0x8] sm:$0xff]
  %v39 = vld [vmem:[%s0 + $0x10] sm:$0xff]
  %v40 = vld [vmem:[%s0 + $0x18] sm:$0xff]
  %v41 = vld [vmem:[%s0 + $0x20] sm:$0xff]
  %v42 = vld [vmem:[%s0 + $0x28] sm:$0xff]
  %v43 = vld [vmem:[%s0 + $0x30] sm:$0xff]
  %v44 = vld [vmem:[%s0 + $0x38] sm:$0xff]
  %v45 = vld [vmem:[%s2] sm:$0x3]
  %v46 = vld [vmem:[%s4] sm:$0x1]
  %v48 = vperm.slane %v46, 0
  %vm50 = vcmask 15360
  %v52 = vsel %vm50, %v37, 0
  %v55 = vsel %vm50, %v38, 0
  %v58 = vsel %vm50, %v39, 0
  %v61 = vsel %vm50, %v40, 0
  %v64 = vsel %vm50, %v41, 0
  %v67 = vsel %vm50, %v42, 0
  %v70 = vsel %vm50, %v43, 0
  %v73 = vsel %vm50, %v44, 0
  %vm75 = vcmask 1041408
  %v77 = vsel %vm75, %v45, 0
  %79 = vmatpush.msra.mxu0 0.0
  %80 = vmatpush.msra.mxu0 0.0
  %81 = vmatpush.msra.mxu0 0.0
  %82 = vmatpush.msra.mxu0 0.0
  %83 = vmatpush.msra.mxu0 0.0
  %84 = vmatpush.msra.mxu0 0.0
  %85 = vmatpush.msra.mxu0 0.0
  %86 = vmatpush.msra.mxu0 0.0
  %87 = vmatpush.msra.mxu0 0.0
  %88 = vmatpush.msra.mxu0 0.0
  %89 = vmatpush.msra.mxu0 0.0
  %90 = vmatpush.msra.mxu0 0.0
  %91 = vmatpush.msra.mxu0 0.0
  %92 = vmatpush.msra.mxu0 0.0
  %93 = vmatpush.msra.mxu0 0.0
  %94 = vmatpush.msra.mxu0 %v77
  %95 = vmatmul.f32.gmra.mxu0 %v52
  %v96 = vpop.f32.mrf.mxu0
  %v97 = vadd.f32 %v48, %v96
  %98 = vmatmul.f32.gmra.mxu0 %v55
  %v99 = vpop.f32.mrf.mxu0
  %v100 = vadd.f32 %v48, %v99
  %101 = vmatmul.f32.gmra.mxu0 %v58
  %v102 = vpop.f32.mrf.mxu0
  %v103 = vadd.f32 %v48, %v102
  %104 = vmatmul.f32.gmra.mxu0 %v61
  %v105 = vpop.f32.mrf.mxu0
  %v106 = vadd.f32 %v48, %v105
  %107 = vmatmul.f32.gmra.mxu0 %v64
  %v108 = vpop.f32.mrf.mxu0
  %v109 = vadd.f32 %v48, %v108
  %110 = vmatmul.f32.gmra.mxu0 %v67
  %v111 = vpop.f32.mrf.mxu0
  %v112 = vadd.f32 %v48, %v111
  %113 = vmatmul.f32.gmra.mxu0 %v70
  %v114 = vpop.f32.mrf.mxu0
  %v115 = vadd.f32 %v48, %v114
  %116 = vmatmul.f32.gmra.mxu0 %v73
  %v117 = vpop.f32.mrf.mxu0
  %v118 = vadd.f32 %v48, %v117
  %119 = vdwg.mxu0
  %v120 = vld [vmem:[%s3] sm:$0xff]
  %v121 = vld [vmem:[%s3 + $0x8] sm:$0xff]
  %v122 = vld [vmem:[%s3 + $0x10] sm:$0xff]
  %v123 = vld [vmem:[%s3 + $0x18] sm:$0xff]
  %v124 = vld [vmem:[%s8] sm:$0xff]
  %vm125 = vcmask 261120
  %v127 = vsel %vm125, %v124, 0
  %129 = vmatpush.msra.mxu0 0.0
  %130 = vmatpush.msra.mxu0 0.0
  %131 = vmatpush.msra.mxu0 0.0
  %132 = vmatpush.msra.mxu0 0.0
  %133 = vmatpush.msra.mxu0 0.0
  %134 = vmatpush.msra.mxu0 0.0
  %135 = vmatpush.msra.mxu0 0.0
  %136 = vmatpush.msra.mxu0 0.0
  %137 = vmatpush.msra.mxu0 0.0
  %138 = vmatpush.msra.mxu0 0.0
  %139 = vmatpush.msra.mxu0 0.0
  %140 = vmatpush.msra.mxu0 0.0
  %141 = vmatpush.msra.mxu0 %v123
  %142 = vmatpush.msra.mxu0 %v122
  %143 = vmatpush.msra.mxu0 %v121
  %144 = vmatpush.msra.mxu0 %v120
  %145 = vmatmul.f32.gmra.mxu0 %v127
  %v146 = vpop.f32.mrf.mxu0
  %v147 = vadd.f32 0.0, %v146
  %148 = vdwg.mxu0
  %v149 = vadd.f32 %v97, %v147
  %v150 = vtanh.pop %v149
  %151 = vst.msk [vmem:[#allocation2] sm:$0xff] %vm125, %v150
  %v153 = vsel %vm125, %v150, 0
  %155 = vmatpush.msra.mxu0 0.0
  %156 = vmatpush.msra.mxu0 0.0
  %157 = vmatpush.msra.mxu0 0.0
  %158 = vmatpush.msra.mxu0 0.0
  %159 = vmatpush.msra.mxu0 0.0
  %160 = vmatpush.msra.mxu0 0.0
  %161 = vmatpush.msra.mxu0 0.0
  %162 = vmatpush.msra.mxu0 0.0
  %163 = vmatpush.msra.mxu0 0.0
  %164 = vmatpush.msra.mxu0 0.0
  %165 = vmatpush.msra.mxu0 0.0
  %166 = vmatpush.msra.mxu0 0.0
  %167 = vmatpush.msra.mxu0 %v123
  %168 = vmatpush.msra.mxu0 %v122
  %169 = vmatpush.msra.mxu0 %v121
  %170 = vmatpush.msra.mxu0 %v120
  %171 = vmatmul.f32.gmra.mxu0 %v153
  %v172 = vpop.f32.mrf.mxu0
  %v173 = vadd.f32 0.0, %v172
  %174 = vdwg.mxu0
  %v175 = vadd.f32 %v100, %v173
  %v176 = vtanh.pop %v175
  %s177 = scalar_lea.vmem [#allocation2], 8
  %178 = vst.msk [vmem:[%s177] sm:$0xff] %vm125, %v176
  %v180 = vsel %vm125, %v176, 0
  %182 = vmatpush.msra.mxu0 0.0
  %183 = vmatpush.msra.mxu0 0.0
  %184 = vmatpush.msra.mxu0 0.0
  %185 = vmatpush.msra.mxu0 0.0
  %186 = vmatpush.msra.mxu0 0.0
  %187 = vmatpush.msra.mxu0 0.0
  %188 = vmatpush.msra.mxu0 0.0
  %189 = vmatpush.msra.mxu0 0.0
  %190 = vmatpush.msra.mxu0 0.0
  %191 = vmatpush.msra.mxu0 0.0
  %192 = vmatpush.msra.mxu0 0.0
  %193 = vmatpush.msra.mxu0 0.0
  %194 = vmatpush.msra.mxu0 %v123
  %195 = vmatpush.msra.mxu0 %v122
  %196 = vmatpush.msra.mxu0 %v121
  %197 = vmatpush.msra.mxu0 %v120
  %198 = vmatmul.f32.gmra.mxu0 %v180
  %v199 = vpop.f32.mrf.mxu0
  %v200 = vadd.f32 0.0, %v199
  %201 = vdwg.mxu0
  %v202 = vadd.f32 %v103, %v200
  %v203 = vtanh.pop %v202
  %s204 = scalar_lea.vmem [#allocation2], 16
  %205 = vst.msk [vmem:[%s204] sm:$0xff] %vm125, %v203
  %v207 = vsel %vm125, %v203, 0
  %209 = vmatpush.msra.mxu0 0.0
  %210 = vmatpush.msra.mxu0 0.0
  %211 = vmatpush.msra.mxu0 0.0
  %212 = vmatpush.msra.mxu0 0.0
  %213 = vmatpush.msra.mxu0 0.0
  %214 = vmatpush.msra.mxu0 0.0
  %215 = vmatpush.msra.mxu0 0.0
  %216 = vmatpush.msra.mxu0 0.0
  %217 = vmatpush.msra.mxu0 0.0
  %218 = vmatpush.msra.mxu0 0.0
  %219 = vmatpush.msra.mxu0 0.0
  %220 = vmatpush.msra.mxu0 0.0
  %221 = vmatpush.msra.mxu0 %v123
  %222 = vmatpush.msra.mxu0 %v122
  %223 = vmatpush.msra.mxu0 %v121
  %224 = vmatpush.msra.mxu0 %v120
  %225 = vmatmul.f32.gmra.mxu0 %v207
  %v226 = vpop.f32.mrf.mxu0
  %v227 = vadd.f32 0.0, %v226
  %228 = vdwg.mxu0
  %v229 = vadd.f32 %v106, %v227
  %v230 = vtanh.pop %v229
  %s231 = scalar_lea.vmem [#allocation2], 24
  %232 = vst.msk [vmem:[%s231] sm:$0xff] %vm125, %v230
  %v234 = vsel %vm125, %v230, 0
  %236 = vmatpush.msra.mxu0 0.0
  %237 = vmatpush.msra.mxu0 0.0
  %238 = vmatpush.msra.mxu0 0.0
  %239 = vmatpush.msra.mxu0 0.0
  %240 = vmatpush.msra.mxu0 0.0
  %241 = vmatpush.msra.mxu0 0.0
  %242 = vmatpush.msra.mxu0 0.0
  %243 = vmatpush.msra.mxu0 0.0
  %244 = vmatpush.msra.mxu0 0.0
  %245 = vmatpush.msra.mxu0 0.0
  %246 = vmatpush.msra.mxu0 0.0
  %247 = vmatpush.msra.mxu0 0.0
  %248 = vmatpush.msra.mxu0 %v123
  %249 = vmatpush.msra.mxu0 %v122
  %250 = vmatpush.msra.mxu0 %v121
  %251 = vmatpush.msra.mxu0 %v120
  %252 = vmatmul.f32.gmra.mxu0 %v234
  %v253 = vpop.f32.mrf.mxu0
  %v254 = vadd.f32 0.0, %v253
  %255 = vdwg.mxu0
  %v256 = vadd.f32 %v109, %v254
  %v257 = vtanh.pop %v256
  %s258 = scalar_lea.vmem [#allocation2], 32
  %259 = vst.msk [vmem:[%s258] sm:$0xff] %vm125, %v257
  %v261 = vsel %vm125, %v257, 0
  %263 = vmatpush.msra.mxu0 0.0
  %264 = vmatpush.msra.mxu0 0.0
  %265 = vmatpush.msra.mxu0 0.0
  %266 = vmatpush.msra.mxu0 0.0
  %267 = vmatpush.msra.mxu0 0.0
  %268 = vmatpush.msra.mxu0 0.0
  %269 = vmatpush.msra.mxu0 0.0
  %270 = vmatpush.msra.mxu0 0.0
  %271 = vmatpush.msra.mxu0 0.0
  %272 = vmatpush.msra.mxu0 0.0
  %273 = vmatpush.msra.mxu0 0.0
  %274 = vmatpush.msra.mxu0 0.0
  %275 = vmatpush.msra.mxu0 %v123
  %276 = vmatpush.msra.mxu0 %v122
  %277 = vmatpush.msra.mxu0 %v121
  %278 = vmatpush.msra.mxu0 %v120
  %279 = vmatmul.f32.gmra.mxu0 %v261
  %v280 = vpop.f32.mrf.mxu0
  %v281 = vadd.f32 0.0, %v280
  %282 = vdwg.mxu0
  %v283 = vadd.f32 %v112, %v281
  %v284 = vtanh.pop %v283
  %s285 = scalar_lea.vmem [#allocation2], 40
  %286 = vst.msk [vmem:[%s285] sm:$0xff] %vm125, %v284
  %v288 = vsel %vm125, %v284, 0
  %290 = vmatpush.msra.mxu0 0.0
  %291 = vmatpush.msra.mxu0 0.0
  %292 = vmatpush.msra.mxu0 0.0
  %293 = vmatpush.msra.mxu0 0.0
  %294 = vmatpush.msra.mxu0 0.0
  %295 = vmatpush.msra.mxu0 0.0
  %296 = vmatpush.msra.mxu0 0.0
  %297 = vmatpush.msra.mxu0 0.0
  %298 = vmatpush.msra.mxu0 0.0
  %299 = vmatpush.msra.mxu0 0.0
  %300 = vmatpush.msra.mxu0 0.0
  %301 = vmatpush.msra.mxu0 0.0
  %302 = vmatpush.msra.mxu0 %v123
  %303 = vmatpush.msra.mxu0 %v122
  %304 = vmatpush.msra.mxu0 %v121
  %305 = vmatpush.msra.mxu0 %v120
  %306 = vmatmul.f32.gmra.mxu0 %v288
  %v307 = vpop.f32.mrf.mxu0
  %v308 = vadd.f32 0.0, %v307
  %309 = vdwg.mxu0
  %v310 = vadd.f32 %v115, %v308
  %v311 = vtanh.pop %v310
  %s312 = scalar_lea.vmem [#allocation2], 48
  %313 = vst.msk [vmem:[%s312] sm:$0xff] %vm125, %v311
  %v315 = vsel %vm125, %v311, 0
  %317 = vmatpush.msra.mxu0 0.0
  %318 = vmatpush.msra.mxu0 0.0
  %319 = vmatpush.msra.mxu0 0.0
  %320 = vmatpush.msra.mxu0 0.0
  %321 = vmatpush.msra.mxu0 0.0
  %322 = vmatpush.msra.mxu0 0.0
  %323 = vmatpush.msra.mxu0 0.0
  %324 = vmatpush.msra.mxu0 0.0
  %325 = vmatpush.msra.mxu0 0.0
  %326 = vmatpush.msra.mxu0 0.0
  %327 = vmatpush.msra.mxu0 0.0
  %328 = vmatpush.msra.mxu0 0.0
  %329 = vmatpush.msra.mxu0 %v123
  %330 = vmatpush.msra.mxu0 %v122
  %331 = vmatpush.msra.mxu0 %v121
  %332 = vmatpush.msra.mxu0 %v120
  %333 = vmatmul.f32.gmra.mxu0 %v315
  %v334 = vpop.f32.mrf.mxu0
  %v335 = vadd.f32 0.0, %v334
  %336 = vdwg.mxu0
  %v337 = vadd.f32 %v118, %v335
  %v338 = vtanh.pop %v337
  %s339 = scalar_lea.vmem [#allocation2], 56
  %340 = vst.msk [vmem:[%s339] sm:$0xff] %vm125, %v338
  %341 = vst.msk [vmem:[%s8] sm:$0xff] %vm125, %v338
  %v342 = vld [vmem:[#allocation2] sm:$0xff]
  %v343 = vld [vmem:[#allocation2 + $0x8] sm:$0xff]
  %v344 = vld [vmem:[#allocation2 + $0x10] sm:$0xff]
  %v345 = vld [vmem:[#allocation2 + $0x18] sm:$0xff]
  %v346 = vld [vmem:[#allocation2 + $0x20] sm:$0xff]
  %v347 = vld [vmem:[#allocation2 + $0x28] sm:$0xff]
  %v348 = vld [vmem:[#allocation2 + $0x30] sm:$0xff]
  %v349 = vld [vmem:[#allocation2 + $0x38] sm:$0xff]
  %v350 = vld [vmem:[%s5] sm:$0x1]
  %v352 = vperm.slane %v350, 0
  %v354 = vmul.f32 %v342, %v352
  %v355 = vmul.f32 %v343, %v352
  %v356 = vmul.f32 %v344, %v352
  %v357 = vmul.f32 %v345, %v352
  %v358 = vmul.f32 %v346, %v352
  %v359 = vmul.f32 %v347, %v352
  %v360 = vmul.f32 %v348, %v352
  %v361 = vmul.f32 %v349, %v352
  %v362 = vsel %vm125, %v354, 0.0
  %363 = vadd.xlane.f32.xlu0 %v362
  %v364 = vpop.xlane.xlu0 %363
  %v365 = vsel %vm125, %v355, 0.0
  %366 = vadd.xlane.f32.xlu0 %v365
  %v367 = vpop.xlane.xlu0 %366
  %v368 = vsel %vm125, %v356, 0.0
  %369 = vadd.xlane.f32.xlu0 %v368
  %v370 = vpop.xlane.xlu0 %369
  %v371 = vsel %vm125, %v357, 0.0
  %372 = vadd.xlane.f32.xlu0 %v371
  %v373 = vpop.xlane.xlu0 %372
  %v374 = vsel %vm125, %v358, 0.0
  %375 = vadd.xlane.f32.xlu0 %v374
  %v376 = vpop.xlane.xlu0 %375
  %v377 = vsel %vm125, %v359, 0.0
  %378 = vadd.xlane.f32.xlu0 %v377
  %v379 = vpop.xlane.xlu0 %378
  %v380 = vsel %vm125, %v360, 0.0
  %381 = vadd.xlane.f32.xlu0 %v380
  %v382 = vpop.xlane.xlu0 %381
  %v383 = vsel %vm125, %v361, 0.0
  %384 = vadd.xlane.f32.xlu0 %v383
  %v385 = vpop.xlane.xlu0 %384
  %v394 = vlaneseq
  %v395 = vand.u32 %v394, 127
  %v396 = vperm.slane %v364, %v395
  %v397 = vperm.slane %v367, %v395
  %v398 = vperm.slane %v370, %v395
  %v399 = vperm.slane %v373, %v395
  %v400 = vperm.slane %v376, %v395
  %v401 = vperm.slane %v379, %v395
  %v402 = vperm.slane %v382, %v395
  %v403 = vperm.slane %v385, %v395
  %vm404 = vcmask 1041409
  %v405 = vsel %vm404, %v397, %v396
  %vm406 = vcmask 1042434
  %v407 = vsel %vm406, %v398, %v405
  %vm408 = vcmask 1043459
  %v409 = vsel %vm408, %v399, %v407
  %vm410 = vcmask 1044484
  %v411 = vsel %vm410, %v400, %v409
  %vm412 = vcmask 1045509
  %v413 = vsel %vm412, %v401, %v411
  %vm414 = vcmask 1046534
  %v415 = vsel %vm414, %v402, %v413
  %vm416 = vcmask 1047559
  %v417 = vsel %vm416, %v403, %v415
  %419 = vxpose.xlu0.b32.start [1/16] %v417, 128
  %420 = vxpose.xlu0.b32.cont [2/16] 0.0, 128
  %421 = vxpose.xlu0.b32.cont [3/16] 0.0, 128
  %422 = vxpose.xlu0.b32.cont [4/16] 0.0, 128
  %423 = vxpose.xlu0.b32.cont [5/16] 0.0, 128
  %424 = vxpose.xlu0.b32.cont [6/16] 0.0, 128
  %425 = vxpose.xlu0.b32.cont [7/16] 0.0, 128
  %426 = vxpose.xlu0.b32.cont [8/16] 0.0, 128
  %427 = vxpose.xlu0.b32.cont [9/16] 0.0, 128
  %428 = vxpose.xlu0.b32.cont [10/16] 0.0, 128
  %429 = vxpose.xlu0.b32.cont [11/16] 0.0, 128
  %430 = vxpose.xlu0.b32.cont [12/16] 0.0, 128
  %431 = vxpose.xlu0.b32.cont [13/16] 0.0, 128
  %432 = vxpose.xlu0.b32.cont [14/16] 0.0, 128
  %433 = vxpose.xlu0.b32.cont [15/16] 0.0, 128
  %434 = vxpose.xlu0.b32.end [16/16] 0.0, 128
  %v435 = vpop.trf.xlu0
  %v436 = vpop.trf.xlu0
  %v437 = vpop.trf.xlu0
  %v438 = vpop.trf.xlu0
  %v439 = vpop.trf.xlu0
  %v440 = vpop.trf.xlu0
  %v441 = vpop.trf.xlu0
  %v442 = vpop.trf.xlu0
  %v443 = vpop.trf.xlu0
  %v444 = vpop.trf.xlu0
  %v445 = vpop.trf.xlu0
  %v446 = vpop.trf.xlu0
  %v447 = vpop.trf.xlu0
  %v448 = vpop.trf.xlu0
  %v449 = vpop.trf.xlu0
  %v450 = vpop.trf.xlu0
  %v451 = vld [vmem:[#allocation3] sm:$0x1]
  %v453 = vperm.slane %v451, 0
  %454 = vset.pattern.permute.xlu0 0
  %455 = vperm.xlu0 %454, %v453
  %v456 = vpop.permute.xlu0 %455
  %v458 = vadd.f32 %v435, %v456
  %vm459 = vcmask 64512
  %460 = vst.msk [vmem:[%s7] sm:$0xff] %vm459, %v458
  // Predicated region
  $region34: #{rnn_forward.1} parent=0 // pred_check
    _
  $region35: #{rnn_forward.1} parent=0 // pred_check_branch
    %462 = sbr.rel (0) target = $region37
  $region36: #{rnn_forward.1} parent=0 // pred_region
    _
  $region37: #{rnn_forward.1} parent=0 // pred_fallthru
    _
  // Predicated region
  $region38: #{rnn_forward.1} parent=0 // pred_check
    _
  $region39: #{rnn_forward.1} parent=0 // pred_check_branch
    %464 = sbr.rel (0) target = $region41
  $region40: #{rnn_forward.1} parent=0 // pred_region
    _
  $region41: #{rnn_forward.1} parent=0 // pred_fallthru
    _
  // Predicated region
  $region42: #{rnn_forward.1} parent=0 // pred_check
    _
  $region43: #{rnn_forward.1} parent=0 // pred_check_branch
    %466 = sbr.rel (0) target = $region45
  $region44: #{rnn_forward.1} parent=0 // pred_region
    _
  $region45: #{rnn_forward.1} parent=0 // pred_fallthru
    _
  // Predicated region
  $region46: #{rnn_forward.1} parent=0 // pred_check
    _
  $region47: #{rnn_forward.1} parent=0 // pred_check_branch
    %468 = sbr.rel (0) target = $region49
  $region48: #{rnn_forward.1} parent=0 // pred_region
    _
  $region49: #{rnn_forward.1} parent=0 // pred_fallthru
    _

</llo_original>
